<compile_context>
chip_gen: v7x
topology: tpu7x:2x2x1
jax: 0.10.0
libtpu: 0.0.40
codegen_flags: <defaults>
</compile_context>

<pallas_src>
import functools

import jax
import jax.numpy as jnp
from jax.experimental import pallas as pl
from jax.experimental.pallas import tpu as pltpu


def _transition_kernel(x_ref, scale_ref, shift_ref, w_ref, o_ref):
    # x_ref:     (4, TM, C_in)   4 = position inside the 2x2 pool window
    # scale_ref: (1, 1, C_in)    folded BN scale   gamma / sqrt(var + eps)
    # shift_ref: (1, 1, C_in)    folded BN shift   beta  - mean * scale
    # w_ref:     (C_in, C_out_pad) bf16, 1x1 conv weight with 0.25 pool factor
    # o_ref:     (TM, C_out_pad)
    y = x_ref[...] * scale_ref[...] + shift_ref[...]      # BatchNorm (eval mode)
    y = jnp.maximum(y, 0.0)                               # ReLU
    pooled = jnp.sum(y, axis=0)                           # 2x2 pool (sum; /4 is in w)
    o_ref[...] = jnp.dot(
        pooled.astype(jnp.bfloat16), w_ref[...],
        preferred_element_type=jnp.float32,
    ).astype(o_ref.dtype)                                 # 1x1 conv (MXU matmul)


@functools.partial(jax.jit, static_argnames=("eps", "tile_m"))
def transitionden_forward(x_nchw, gamma, beta, running_mean, running_var,
                          conv_w, *, eps=1e-5, tile_m=512):
    """Pallas implementation of Transitionden.forward.

    x_nchw : (N, C_in, H, W)  float32
    conv_w : (C_out, C_in, 1, 1)  (PyTorch Conv2d weight layout)
    returns: (N, C_out, H//2, W//2)
    """
    N, C, H, W = x_nchw.shape
    C_out = conv_w.shape[0]
    Ho, Wo = H // 2, W // 2
    M = N * Ho * Wo

    # Fold BN into per-channel scale/shift.
    scale = gamma / jnp.sqrt(running_var + eps)
    shift = beta - running_mean * scale

    # NCHW -> (4, M, C) pixel groups with a SINGLE materializing transpose.
    # axes of x6: (N, C, Ho, h2, Wo, w2) -> (h2, w2, N, Ho, Wo, C)
    x6 = x_nchw.reshape(N, C, Ho, 2, Wo, 2)
    x_groups = jnp.transpose(x6, (3, 5, 0, 2, 4, 1)).reshape(4, M, C)

    # Lane-dense output channels (multiple of 128); pad columns, slice later.
    C_out_pad = pl.cdiv(C_out, 128) * 128

    # Tile size: as large as possible, capped against a v7x-safe VMEM budget.
    xbytes = x_nchw.dtype.itemsize
    obytes = xbytes
    per_row = 2 * (4 * C * xbytes + C_out_pad * obytes)   # dbl-buffered in+out
    budget = 40 * 1024 * 1024                             # fits v7x 64 MiB VMEM
    tm_cap = max(8, (budget // per_row) // 8 * 8)
    tm = max(8, (min(tile_m, tm_cap, ((M + 7) // 8) * 8) // 8) * 8)

    M_pad = pl.cdiv(M, tm) * tm
    if M_pad != M:
        # Padded rows produce garbage but are sliced off below.
        x_groups = jnp.pad(x_groups, ((0, 0), (0, M_pad - M), (0, 0)))

    # 1x1 conv weight -> (C_in, C_out_pad), bf16, pool factor folded in.
    w_mat = (conv_w.reshape(C_out, C).T * 0.25).astype(jnp.bfloat16)
    if C_out_pad != C_out:
        w_mat = jnp.pad(w_mat, ((0, 0), (0, C_out_pad - C_out)))

    scale3 = scale.reshape(1, 1, C).astype(x_nchw.dtype)
    shift3 = shift.reshape(1, 1, C).astype(x_nchw.dtype)

    # Explicit VMEM budget (double-buffered x/out tiles + weight + BN vecs).
    vmem_limit = (2 * tm * (4 * C * xbytes + C_out_pad * obytes)
                  + 2 * C * C_out_pad * 2
                  + 4 * C * xbytes
                  + (4 << 20))
    vmem_limit = int(max(vmem_limit, 32 << 20))

    grid = (M_pad // tm,)
    out_flat = pl.pallas_call(
        _transition_kernel,
        out_shape=jax.ShapeDtypeStruct((M_pad, C_out_pad), x_nchw.dtype),
        grid=grid,
        in_specs=[
            pl.BlockSpec((4, tm, C), lambda i: (0, i, 0)),
            pl.BlockSpec((1, 1, C), lambda i: (0, 0, 0)),
            pl.BlockSpec((1, 1, C), lambda i: (0, 0, 0)),
            pl.BlockSpec((C, C_out_pad), lambda i: (0, 0)),
        ],
        out_specs=pl.BlockSpec((tm, C_out_pad), lambda i: (i, 0)),
        compiler_params=pltpu.CompilerParams(
            dimension_semantics=("parallel",),
            vmem_limit_bytes=vmem_limit),
    )(x_groups, scale3, shift3, w_mat)

    out = out_flat[:M, :C_out].reshape(N, Ho, Wo, C_out)
    return jnp.transpose(out, (0, 3, 1, 2))       # back to NCHW


def _reference(x, gamma, beta, mean, var, conv_w, eps=1e-5):
    """Pure-JAX reference matching PyTorch eval-mode forward (NCHW, f32)."""
    y = (x - mean[None, :, None, None]) / jnp.sqrt(var + eps)[None, :, None, None]
    y = y * gamma[None, :, None, None] + beta[None, :, None, None]
    y = jnp.maximum(y, 0.0)
    w = conv_w[:, :, 0, 0]                                   # (C_out, C_in)
    y = jnp.einsum("oc,nchw->nohw", w, y)
    N, Co, H, W = y.shape
    y = y.reshape(N, Co, H // 2, 2, W // 2, 2).mean(axis=(3, 5))
    return y


if __name__ == "__main__":
    key = jax.random.PRNGKey(0)
    k_x, k_g, k_b, k_m, k_v, k_w = jax.random.split(key, 6)

    in_planes, out_planes = 4, 8
    N, H, W = 2, 16, 16

    x = jax.random.normal(k_x, (N, in_planes, H, W), jnp.float32)
    gamma = jax.random.normal(k_g, (in_planes,), jnp.float32) * 0.1 + 1.0
    beta = jax.random.normal(k_b, (in_planes,), jnp.float32) * 0.1
    running_mean = jax.random.normal(k_m, (in_planes,), jnp.float32) * 0.1
    running_var = jax.random.uniform(k_v, (in_planes,), jnp.float32,
                                     minval=0.5, maxval=1.5)
    conv_w = jax.random.normal(k_w, (out_planes, in_planes, 1, 1),
                               jnp.float32) * 0.1

    out = transitionden_forward(x, gamma, beta, running_mean, running_var, conv_w)
    out = jax.block_until_ready(out)

    ref = _reference(x, gamma, beta, running_mean, running_var, conv_w)
    assert out.shape == (N, out_planes, H // 2, W // 2), out.shape
    # Tolerances loosened for the bf16 MXU matmul (f32 accumulate).
    assert jnp.allclose(out, ref, rtol=2e-2, atol=2e-2), (
        float(jnp.max(jnp.abs(out - ref))))

    print("KERNEL_OK")
</pallas_src>

<mosaic_0001>
module attributes {stable_mosaic.version = 11 : i64} {
  func.func @_transition_kernel(%arg0: i32, %arg1: memref<4x128x4xf32, #tpu.memory_space<vmem>>, %arg2: memref<1x1x4xf32, #tpu.memory_space<vmem>>, %arg3: memref<1x1x4xf32, #tpu.memory_space<vmem>>, %arg4: memref<4x128xbf16, #tpu.memory_space<vmem>>, %arg5: memref<128x128xf32, #tpu.memory_space<vmem>>) attributes {dimension_semantics = [#tpu.dimension_semantics<parallel>], iteration_bounds = array<i64: 1>, scalar_prefetch = 0 : i64, scratch_operands = 0 : i64, tpu.core_type = #tpu.core_type<tc>, window_params = [{transform_indices = @transform_0, window_bounds = array<i64: 4, 128, 4>}, {pipeline_mode = #tpu.pipeline_mode<synchronous>, transform_indices = @transform_1, window_bounds = array<i64: 1, 1, 4>}, {pipeline_mode = #tpu.pipeline_mode<synchronous>, transform_indices = @transform_2, window_bounds = array<i64: 1, 1, 4>}, {pipeline_mode = #tpu.pipeline_mode<synchronous>, transform_indices = @transform_3, window_bounds = array<i64: 4, 128>}, {transform_indices = @transform_4, window_bounds = array<i64: 128, 128>}]} {
    %c0 = arith.constant 0 : index
    %c0_0 = arith.constant 0 : index
    %c0_1 = arith.constant 0 : index
    %0 = vector.load %arg1[%c0, %c0_0, %c0_1] : memref<4x128x4xf32, #tpu.memory_space<vmem>>, vector<4x128x4xf32>
    %c0_2 = arith.constant 0 : index
    %c0_3 = arith.constant 0 : index
    %c0_4 = arith.constant 0 : index
    %1 = vector.load %arg2[%c0_2, %c0_3, %c0_4] : memref<1x1x4xf32, #tpu.memory_space<vmem>>, vector<1x1x4xf32>
    %2 = vector.broadcast %1 : vector<1x1x4xf32> to vector<4x128x4xf32>
    %3 = arith.mulf %0, %2 : vector<4x128x4xf32>
    %c0_5 = arith.constant 0 : index
    %c0_6 = arith.constant 0 : index
    %c0_7 = arith.constant 0 : index
    %4 = vector.load %arg3[%c0_5, %c0_6, %c0_7] : memref<1x1x4xf32, #tpu.memory_space<vmem>>, vector<1x1x4xf32>
    %5 = vector.broadcast %4 : vector<1x1x4xf32> to vector<4x128x4xf32>
    %6 = arith.addf %3, %5 : vector<4x128x4xf32>
    %cst = arith.constant 0.000000e+00 : f32
    %7 = vector.broadcast %cst : f32 to vector<4x128x4xf32>
    %8 = arith.maximumf %6, %7 : vector<4x128x4xf32>
    %cst_8 = arith.constant dense<0.000000e+00> : vector<128x4xf32>
    %9 = vector.multi_reduction <add>, %8, %cst_8 [0] : vector<4x128x4xf32> to vector<128x4xf32>
    %10 = arith.truncf %9 : vector<128x4xf32> to vector<128x4xbf16>
    %c0_9 = arith.constant 0 : index
    %c0_10 = arith.constant 0 : index
    %11 = vector.load %arg4[%c0_9, %c0_10] : memref<4x128xbf16, #tpu.memory_space<vmem>>, vector<4x128xbf16>
    %cst_11 = arith.constant dense<0.000000e+00> : vector<128x128xf32>
    %12 = tpu.matmul %10, %11, %cst_11 {dimension_numbers = #tpu.dot_dimension_numbers<[1], [0], [0], [1], [0, 0, 1, 1], [], []>} : vector<128x4xbf16>, vector<4x128xbf16>, vector<128x128xf32> -> vector<128x128xf32>
    %c0_12 = arith.constant 0 : index
    %c0_13 = arith.constant 0 : index
    %13 = vector.load %arg5[%c0_12, %c0_13] : memref<128x128xf32, #tpu.memory_space<vmem>>, vector<128x128xf32>
    tpu.vector_store %arg5[%c0_12, %c0_13], %12 {strides = array<i32>} : memref<128x128xf32, #tpu.memory_space<vmem>>, vector<128x128xf32>,
    return
  }
  func.func @transform_0(%arg0: i32) -> (i32, i32, i32) {
    %c0_i32 = arith.constant 0 : i32
    %c0_i32_0 = arith.constant 0 : i32
    %c0_i32_1 = arith.constant 0 : i32
    return %c0_i32, %arg0, %c0_i32_0 : i32, i32, i32
  }
  func.func @transform_1(%arg0: i32) -> (i32, i32, i32) {
    %c0_i32 = arith.constant 0 : i32
    %c0_i32_0 = arith.constant 0 : i32
    %c0_i32_1 = arith.constant 0 : i32
    %c0_i32_2 = arith.constant 0 : i32
    return %c0_i32, %c0_i32_0, %c0_i32_1 : i32, i32, i32
  }
  func.func @transform_2(%arg0: i32) -> (i32, i32, i32) {
    %c0_i32 = arith.constant 0 : i32
    %c0_i32_0 = arith.constant 0 : i32
    %c0_i32_1 = arith.constant 0 : i32
    %c0_i32_2 = arith.constant 0 : i32
    return %c0_i32, %c0_i32_0, %c0_i32_1 : i32, i32, i32
  }
  func.func @transform_3(%arg0: i32) -> (i32, i32) {
    %c0_i32 = arith.constant 0 : i32
    %c0_i32_0 = arith.constant 0 : i32
    %c0_i32_1 = arith.constant 0 : i32
    return %c0_i32, %c0_i32_0 : i32, i32
  }
  func.func @transform_4(%arg0: i32) -> (i32, i32) {
    %c0_i32 = arith.constant 0 : i32
    %c0_i32_0 = arith.constant 0 : i32
    return %arg0, %c0_i32 : i32, i32
  }
}

</mosaic_0001>

<llo_original>
// kernel: transitionden_forward.1
$region0: #{transitionden_forward.1}
  #allocation0 [shape = 'u32[]', space=smem, size = 0x4, offset = 0x4, fixed_abs, tag = 'smem constant byte address 0x4 - core index']
  #allocation1 [shape = 'u32[144,128]{1,0:T(1,128)}', space=vmem, size = 0x12000, scoped, tag = 'internal scratch']
  %s0 = inlined_call_operand.vmem [shape: f32[4,128,4], index: 0, kind: input, shape index: {}]
  %s1 = inlined_call_operand.vmem [shape: f32[1,1,4], index: 1, kind: input, shape index: {}]
  %s2 = inlined_call_operand.vmem [shape: f32[1,1,4], index: 2, kind: input, shape index: {}]
  %s3 = inlined_call_operand.vmem [shape: bf16[4,128], index: 3, kind: input, shape index: {}]
  %s4 = inlined_call_operand.vmem [shape: f32[128,128], index: 4, kind: output, shape index: {}]
  %s5 = sld [smem:[#allocation0]]
  $region26: #{transitionden_forward.1} parent=0
    _
  %s7 = ssub.s32 1, %s5
  %s8 = scalar_select 0, %s7, %s5
  // Predicated region
  $region2: #{transitionden_forward.1} parent=0 // pred_check
    _
  $region3: #{transitionden_forward.1} parent=0 // pred_check_branch
    %10 = sbr.rel (0) target = $region5
  $region4: #{transitionden_forward.1} parent=0 // pred_region
    _
  $region5: #{transitionden_forward.1} parent=0 // pred_fallthru
    _
  // Predicated region
  $region6: #{transitionden_forward.1} parent=0 // pred_check
    _
  $region7: #{transitionden_forward.1} parent=0 // pred_check_branch
    %12 = sbr.rel (0) target = $region9
  $region8: #{transitionden_forward.1} parent=0 // pred_region
    _
  $region9: #{transitionden_forward.1} parent=0 // pred_fallthru
    _
  // Predicated region
  $region10: #{transitionden_forward.1} parent=0 // pred_check
    _
  $region11: #{transitionden_forward.1} parent=0 // pred_check_branch
    %14 = sbr.rel (0) target = $region13
  $region12: #{transitionden_forward.1} parent=0 // pred_region
    _
  $region13: #{transitionden_forward.1} parent=0 // pred_fallthru
    _
  // Predicated region
  $region14: #{transitionden_forward.1} parent=0 // pred_check
    _
  $region15: #{transitionden_forward.1} parent=0 // pred_check_branch
    %16 = sbr.rel (0) target = $region17
  $region16: #{transitionden_forward.1} parent=0 // pred_region
    _
  $region17: #{transitionden_forward.1} parent=0 // pred_fallthru
    _
  %v18 = vld [vmem:[%s0] sm:$0xff]
  %v19 = vld [vmem:[%s0 + $0x8] sm:$0xff]
  %v20 = vld [vmem:[%s0 + $0x10] sm:$0xff]
  %v21 = vld [vmem:[%s0 + $0x18] sm:$0xff]
  %v22 = vld [vmem:[%s0 + $0x20] sm:$0xff]
  %v23 = vld [vmem:[%s0 + $0x28] sm:$0xff]
  %v24 = vld [vmem:[%s0 + $0x30] sm:$0xff]
  %v25 = vld [vmem:[%s0 + $0x38] sm:$0xff]
  %v26 = vld [vmem:[%s0 + $0x40] sm:$0xff]
  %v27 = vld [vmem:[%s0 + $0x48] sm:$0xff]
  %v28 = vld [vmem:[%s0 + $0x50] sm:$0xff]
  %v29 = vld [vmem:[%s0 + $0x58] sm:$0xff]
  %v30 = vld [vmem:[%s0 + $0x60] sm:$0xff]
  %v31 = vld [vmem:[%s0 + $0x68] sm:$0xff]
  %v32 = vld [vmem:[%s0 + $0x70] sm:$0xff]
  %v33 = vld [vmem:[%s0 + $0x78] sm:$0xff]
  %v34 = vld [vmem:[%s0 + $0x80] sm:$0xff]
  %v35 = vld [vmem:[%s0 + $0x88] sm:$0xff]
  %v36 = vld [vmem:[%s0 + $0x90] sm:$0xff]
  %v37 = vld [vmem:[%s0 + $0x98] sm:$0xff]
  %v38 = vld [vmem:[%s0 + $0xa0] sm:$0xff]
  %v39 = vld [vmem:[%s0 + $0xa8] sm:$0xff]
  %v40 = vld [vmem:[%s0 + $0xb0] sm:$0xff]
  %v41 = vld [vmem:[%s0 + $0xb8] sm:$0xff]
  %v42 = vld [vmem:[%s0 + $0xc0] sm:$0xff]
  %v43 = vld [vmem:[%s0 + $0xc8] sm:$0xff]
  %v44 = vld [vmem:[%s0 + $0xd0] sm:$0xff]
  %v45 = vld [vmem:[%s0 + $0xd8] sm:$0xff]
  %v46 = vld [vmem:[%s0 + $0xe0] sm:$0xff]
  %v47 = vld [vmem:[%s0 + $0xe8] sm:$0xff]
  %v48 = vld [vmem:[%s0 + $0xf0] sm:$0xff]
  %v49 = vld [vmem:[%s0 + $0xf8] sm:$0xff]
  %v50 = vld [vmem:[%s0 + $0x100] sm:$0xff]
  %v51 = vld [vmem:[%s0 + $0x108] sm:$0xff]
  %v52 = vld [vmem:[%s0 + $0x110] sm:$0xff]
  %v53 = vld [vmem:[%s0 + $0x118] sm:$0xff]
  %v54 = vld [vmem:[%s0 + $0x120] sm:$0xff]
  %v55 = vld [vmem:[%s0 + $0x128] sm:$0xff]
  %v56 = vld [vmem:[%s0 + $0x130] sm:$0xff]
  %v57 = vld [vmem:[%s0 + $0x138] sm:$0xff]
  %v58 = vld [vmem:[%s0 + $0x140] sm:$0xff]
  %v59 = vld [vmem:[%s0 + $0x148] sm:$0xff]
  %v60 = vld [vmem:[%s0 + $0x150] sm:$0xff]
  %v61 = vld [vmem:[%s0 + $0x158] sm:$0xff]
  %v62 = vld [vmem:[%s0 + $0x160] sm:$0xff]
  %v63 = vld [vmem:[%s0 + $0x168] sm:$0xff]
  %v64 = vld [vmem:[%s0 + $0x170] sm:$0xff]
  %v65 = vld [vmem:[%s0 + $0x178] sm:$0xff]
  %v66 = vld [vmem:[%s0 + $0x180] sm:$0xff]
  %v67 = vld [vmem:[%s0 + $0x188] sm:$0xff]
  %v68 = vld [vmem:[%s0 + $0x190] sm:$0xff]
  %v69 = vld [vmem:[%s0 + $0x198] sm:$0xff]
  %v70 = vld [vmem:[%s0 + $0x1a0] sm:$0xff]
  %v71 = vld [vmem:[%s0 + $0x1a8] sm:$0xff]
  %v72 = vld [vmem:[%s0 + $0x1b0] sm:$0xff]
  %v73 = vld [vmem:[%s0 + $0x1b8] sm:$0xff]
  %v74 = vld [vmem:[%s0 + $0x1c0] sm:$0xff]
  %v75 = vld [vmem:[%s0 + $0x1c8] sm:$0xff]
  %v76 = vld [vmem:[%s0 + $0x1d0] sm:$0xff]
  %v77 = vld [vmem:[%s0 + $0x1d8] sm:$0xff]
  %v78 = vld [vmem:[%s0 + $0x1e0] sm:$0xff]
  %v79 = vld [vmem:[%s0 + $0x1e8] sm:$0xff]
  %v80 = vld [vmem:[%s0 + $0x1f0] sm:$0xff]
  %v81 = vld [vmem:[%s0 + $0x1f8] sm:$0xff]
  %v82 = vld [vmem:[%s1] sm:$0x1]
  %v84 = vlaneseq
  %v85 = vshrl.u32 %v84, 7
  %v86 = vsub.s32 0, %v85
  %v87 = vrot.slane %v82, %v86
  %v89 = vmul.f32 %v18, %v87
  %v90 = vmul.f32 %v19, %v87
  %v91 = vmul.f32 %v20, %v87
  %v92 = vmul.f32 %v21, %v87
  %v93 = vmul.f32 %v22, %v87
  %v94 = vmul.f32 %v23, %v87
  %v95 = vmul.f32 %v24, %v87
  %v96 = vmul.f32 %v25, %v87
  %v97 = vmul.f32 %v26, %v87
  %v98 = vmul.f32 %v27, %v87
  %v99 = vmul.f32 %v28, %v87
  %v100 = vmul.f32 %v29, %v87
  %v101 = vmul.f32 %v30, %v87
  %v102 = vmul.f32 %v31, %v87
  %v103 = vmul.f32 %v32, %v87
  %v104 = vmul.f32 %v33, %v87
  %v105 = vmul.f32 %v34, %v87
  %v106 = vmul.f32 %v35, %v87
  %v107 = vmul.f32 %v36, %v87
  %v108 = vmul.f32 %v37, %v87
  %v109 = vmul.f32 %v38, %v87
  %v110 = vmul.f32 %v39, %v87
  %v111 = vmul.f32 %v40, %v87
  %v112 = vmul.f32 %v41, %v87
  %v113 = vmul.f32 %v42, %v87
  %v114 = vmul.f32 %v43, %v87
  %v115 = vmul.f32 %v44, %v87
  %v116 = vmul.f32 %v45, %v87
  %v117 = vmul.f32 %v46, %v87
  %v118 = vmul.f32 %v47, %v87
  %v119 = vmul.f32 %v48, %v87
  %v120 = vmul.f32 %v49, %v87
  %v121 = vmul.f32 %v50, %v87
  %v122 = vmul.f32 %v51, %v87
  %v123 = vmul.f32 %v52, %v87
  %v124 = vmul.f32 %v53, %v87
  %v125 = vmul.f32 %v54, %v87
  %v126 = vmul.f32 %v55, %v87
  %v127 = vmul.f32 %v56, %v87
  %v128 = vmul.f32 %v57, %v87
  %v129 = vmul.f32 %v58, %v87
  %v130 = vmul.f32 %v59, %v87
  %v131 = vmul.f32 %v60, %v87
  %v132 = vmul.f32 %v61, %v87
  %v133 = vmul.f32 %v62, %v87
  %v134 = vmul.f32 %v63, %v87
  %v135 = vmul.f32 %v64, %v87
  %v136 = vmul.f32 %v65, %v87
  %v137 = vmul.f32 %v66, %v87
  %v138 = vmul.f32 %v67, %v87
  %v139 = vmul.f32 %v68, %v87
  %v140 = vmul.f32 %v69, %v87
  %v141 = vmul.f32 %v70, %v87
  %v142 = vmul.f32 %v71, %v87
  %v143 = vmul.f32 %v72, %v87
  %v144 = vmul.f32 %v73, %v87
  %v145 = vmul.f32 %v74, %v87
  %v146 = vmul.f32 %v75, %v87
  %v147 = vmul.f32 %v76, %v87
  %v148 = vmul.f32 %v77, %v87
  %v149 = vmul.f32 %v78, %v87
  %v150 = vmul.f32 %v79, %v87
  %v151 = vmul.f32 %v80, %v87
  %v152 = vmul.f32 %v81, %v87
  %v153 = vld [vmem:[%s2] sm:$0x1]
  %v155 = vlaneseq
  %v156 = vshrl.u32 %v155, 7
  %v157 = vsub.s32 0, %v156
  %v158 = vrot.slane %v153, %v157
  %v160 = vadd.f32 %v89, %v158
  %v161 = vadd.f32 %v90, %v158
  %v162 = vadd.f32 %v91, %v158
  %v163 = vadd.f32 %v92, %v158
  %v164 = vadd.f32 %v93, %v158
  %v165 = vadd.f32 %v94, %v158
  %v166 = vadd.f32 %v95, %v158
  %v167 = vadd.f32 %v96, %v158
  %v168 = vadd.f32 %v97, %v158
  %v169 = vadd.f32 %v98, %v158
  %v170 = vadd.f32 %v99, %v158
  %v171 = vadd.f32 %v100, %v158
  %v172 = vadd.f32 %v101, %v158
  %v173 = vadd.f32 %v102, %v158
  %v174 = vadd.f32 %v103, %v158
  %v175 = vadd.f32 %v104, %v158
  %v176 = vadd.f32 %v105, %v158
  %v177 = vadd.f32 %v106, %v158
  %v178 = vadd.f32 %v107, %v158
  %v179 = vadd.f32 %v108, %v158
  %v180 = vadd.f32 %v109, %v158
  %v181 = vadd.f32 %v110, %v158
  %v182 = vadd.f32 %v111, %v158
  %v183 = vadd.f32 %v112, %v158
  %v184 = vadd.f32 %v113, %v158
  %v185 = vadd.f32 %v114, %v158
  %v186 = vadd.f32 %v115, %v158
  %v187 = vadd.f32 %v116, %v158
  %v188 = vadd.f32 %v117, %v158
  %v189 = vadd.f32 %v118, %v158
  %v190 = vadd.f32 %v119, %v158
  %v191 = vadd.f32 %v120, %v158
  %v192 = vadd.f32 %v121, %v158
  %v193 = vadd.f32 %v122, %v158
  %v194 = vadd.f32 %v123, %v158
  %v195 = vadd.f32 %v124, %v158
  %v196 = vadd.f32 %v125, %v158
  %v197 = vadd.f32 %v126, %v158
  %v198 = vadd.f32 %v127, %v158
  %v199 = vadd.f32 %v128, %v158
  %v200 = vadd.f32 %v129, %v158
  %v201 = vadd.f32 %v130, %v158
  %v202 = vadd.f32 %v131, %v158
  %v203 = vadd.f32 %v132, %v158
  %v204 = vadd.f32 %v133, %v158
  %v205 = vadd.f32 %v134, %v158
  %v206 = vadd.f32 %v135, %v158
  %v207 = vadd.f32 %v136, %v158
  %v208 = vadd.f32 %v137, %v158
  %v209 = vadd.f32 %v138, %v158
  %v210 = vadd.f32 %v139, %v158
  %v211 = vadd.f32 %v140, %v158
  %v212 = vadd.f32 %v141, %v158
  %v213 = vadd.f32 %v142, %v158
  %v214 = vadd.f32 %v143, %v158
  %v215 = vadd.f32 %v144, %v158
  %v216 = vadd.f32 %v145, %v158
  %v217 = vadd.f32 %v146, %v158
  %v218 = vadd.f32 %v147, %v158
  %v219 = vadd.f32 %v148, %v158
  %v220 = vadd.f32 %v149, %v158
  %v221 = vadd.f32 %v150, %v158
  %v222 = vadd.f32 %v151, %v158
  %v223 = vadd.f32 %v152, %v158
  %v224 = vmax.f32 %v160, 0.0
  %v225 = vmax.f32 %v161, 0.0
  %v226 = vmax.f32 %v162, 0.0
  %v227 = vmax.f32 %v163, 0.0
  %v228 = vmax.f32 %v164, 0.0
  %v229 = vmax.f32 %v165, 0.0
  %v230 = vmax.f32 %v166, 0.0
  %v231 = vmax.f32 %v167, 0.0
  %v232 = vmax.f32 %v168, 0.0
  %v233 = vmax.f32 %v169, 0.0
  %v234 = vmax.f32 %v170, 0.0
  %v235 = vmax.f32 %v171, 0.0
  %v236 = vmax.f32 %v172, 0.0
  %v237 = vmax.f32 %v173, 0.0
  %v238 = vmax.f32 %v174, 0.0
  %v239 = vmax.f32 %v175, 0.0
  %v240 = vmax.f32 %v176, 0.0
  %v241 = vmax.f32 %v177, 0.0
  %v242 = vmax.f32 %v178, 0.0
  %v243 = vmax.f32 %v179, 0.0
  %v244 = vmax.f32 %v180, 0.0
  %v245 = vmax.f32 %v181, 0.0
  %v246 = vmax.f32 %v182, 0.0
  %v247 = vmax.f32 %v183, 0.0
  %v248 = vmax.f32 %v184, 0.0
  %v249 = vmax.f32 %v185, 0.0
  %v250 = vmax.f32 %v186, 0.0
  %v251 = vmax.f32 %v187, 0.0
  %v252 = vmax.f32 %v188, 0.0
  %v253 = vmax.f32 %v189, 0.0
  %v254 = vmax.f32 %v190, 0.0
  %v255 = vmax.f32 %v191, 0.0
  %v256 = vmax.f32 %v192, 0.0
  %v257 = vmax.f32 %v193, 0.0
  %v258 = vmax.f32 %v194, 0.0
  %v259 = vmax.f32 %v195, 0.0
  %v260 = vmax.f32 %v196, 0.0
  %v261 = vmax.f32 %v197, 0.0
  %v262 = vmax.f32 %v198, 0.0
  %v263 = vmax.f32 %v199, 0.0
  %v264 = vmax.f32 %v200, 0.0
  %v265 = vmax.f32 %v201, 0.0
  %v266 = vmax.f32 %v202, 0.0
  %v267 = vmax.f32 %v203, 0.0
  %v268 = vmax.f32 %v204, 0.0
  %v269 = vmax.f32 %v205, 0.0
  %v270 = vmax.f32 %v206, 0.0
  %v271 = vmax.f32 %v207, 0.0
  %v272 = vmax.f32 %v208, 0.0
  %v273 = vmax.f32 %v209, 0.0
  %v274 = vmax.f32 %v210, 0.0
  %v275 = vmax.f32 %v211, 0.0
  %v276 = vmax.f32 %v212, 0.0
  %v277 = vmax.f32 %v213, 0.0
  %v278 = vmax.f32 %v214, 0.0
  %v279 = vmax.f32 %v215, 0.0
  %v280 = vmax.f32 %v216, 0.0
  %v281 = vmax.f32 %v217, 0.0
  %v282 = vmax.f32 %v218, 0.0
  %v283 = vmax.f32 %v219, 0.0
  %v284 = vmax.f32 %v220, 0.0
  %v285 = vmax.f32 %v221, 0.0
  %v286 = vmax.f32 %v222, 0.0
  %v287 = vmax.f32 %v223, 0.0
  %vm288 = vcmask 31744
  %v289 = vsel %vm288, %v224, 0.0
  %v290 = vsel %vm288, %v240, 0.0
  %v291 = vadd.f32 %v289, %v290
  %v292 = vsel %vm288, %v256, 0.0
  %v293 = vadd.f32 %v291, %v292
  %v294 = vsel %vm288, %v272, 0.0
  %v295 = vadd.f32 %v293, %v294
  %v296 = vsel %vm288, %v225, 0.0
  %v297 = vsel %vm288, %v241, 0.0
  %v298 = vadd.f32 %v296, %v297
  %v299 = vsel %vm288, %v257, 0.0
  %v300 = vadd.f32 %v298, %v299
  %v301 = vsel %vm288, %v273, 0.0
  %v302 = vadd.f32 %v300, %v301
  %v303 = vsel %vm288, %v226, 0.0
  %v304 = vsel %vm288, %v242, 0.0
  %v305 = vadd.f32 %v303, %v304
  %v306 = vsel %vm288, %v258, 0.0
  %v307 = vadd.f32 %v305, %v306
  %v308 = vsel %vm288, %v274, 0.0
  %v309 = vadd.f32 %v307, %v308
  %v310 = vsel %vm288, %v227, 0.0
  %v311 = vsel %vm288, %v243, 0.0
  %v312 = vadd.f32 %v310, %v311
  %v313 = vsel %vm288, %v259, 0.0
  %v314 = vadd.f32 %v312, %v313
  %v315 = vsel %vm288, %v275, 0.0
  %v316 = vadd.f32 %v314, %v315
  %v317 = vsel %vm288, %v228, 0.0
  %v318 = vsel %vm288, %v244, 0.0
  %v319 = vadd.f32 %v317, %v318
  %v320 = vsel %vm288, %v260, 0.0
  %v321 = vadd.f32 %v319, %v320
  %v322 = vsel %vm288, %v276, 0.0
  %v323 = vadd.f32 %v321, %v322
  %v324 = vsel %vm288, %v229, 0.0
  %v325 = vsel %vm288, %v245, 0.0
  %v326 = vadd.f32 %v324, %v325
  %v327 = vsel %vm288, %v261, 0.0
  %v328 = vadd.f32 %v326, %v327
  %v329 = vsel %vm288, %v277, 0.0
  %v330 = vadd.f32 %v328, %v329
  %v331 = vsel %vm288, %v230, 0.0
  %v332 = vsel %vm288, %v246, 0.0
  %v333 = vadd.f32 %v331, %v332
  %v334 = vsel %vm288, %v262, 0.0
  %v335 = vadd.f32 %v333, %v334
  %v336 = vsel %vm288, %v278, 0.0
  %v337 = vadd.f32 %v335, %v336
  %v338 = vsel %vm288, %v231, 0.0
  %v339 = vsel %vm288, %v247, 0.0
  %v340 = vadd.f32 %v338, %v339
  %v341 = vsel %vm288, %v263, 0.0
  %v342 = vadd.f32 %v340, %v341
  %v343 = vsel %vm288, %v279, 0.0
  %v344 = vadd.f32 %v342, %v343
  %v345 = vsel %vm288, %v232, 0.0
  %v346 = vsel %vm288, %v248, 0.0
  %v347 = vadd.f32 %v345, %v346
  %v348 = vsel %vm288, %v264, 0.0
  %v349 = vadd.f32 %v347, %v348
  %v350 = vsel %vm288, %v280, 0.0
  %v351 = vadd.f32 %v349, %v350
  %v352 = vsel %vm288, %v233, 0.0
  %v353 = vsel %vm288, %v249, 0.0
  %v354 = vadd.f32 %v352, %v353
  %v355 = vsel %vm288, %v265, 0.0
  %v356 = vadd.f32 %v354, %v355
  %v357 = vsel %vm288, %v281, 0.0
  %v358 = vadd.f32 %v356, %v357
  %v359 = vsel %vm288, %v234, 0.0
  %v360 = vsel %vm288, %v250, 0.0
  %v361 = vadd.f32 %v359, %v360
  %v362 = vsel %vm288, %v266, 0.0
  %v363 = vadd.f32 %v361, %v362
  %v364 = vsel %vm288, %v282, 0.0
  %v365 = vadd.f32 %v363, %v364
  %v366 = vsel %vm288, %v235, 0.0
  %v367 = vsel %vm288, %v251, 0.0
  %v368 = vadd.f32 %v366, %v367
  %v369 = vsel %vm288, %v267, 0.0
  %v370 = vadd.f32 %v368, %v369
  %v371 = vsel %vm288, %v283, 0.0
  %v372 = vadd.f32 %v370, %v371
  %v373 = vsel %vm288, %v236, 0.0
  %v374 = vsel %vm288, %v252, 0.0
  %v375 = vadd.f32 %v373, %v374
  %v376 = vsel %vm288, %v268, 0.0
  %v377 = vadd.f32 %v375, %v376
  %v378 = vsel %vm288, %v284, 0.0
  %v379 = vadd.f32 %v377, %v378
  %v380 = vsel %vm288, %v237, 0.0
  %v381 = vsel %vm288, %v253, 0.0
  %v382 = vadd.f32 %v380, %v381
  %v383 = vsel %vm288, %v269, 0.0
  %v384 = vadd.f32 %v382, %v383
  %v385 = vsel %vm288, %v285, 0.0
  %v386 = vadd.f32 %v384, %v385
  %v387 = vsel %vm288, %v238, 0.0
  %v388 = vsel %vm288, %v254, 0.0
  %v389 = vadd.f32 %v387, %v388
  %v390 = vsel %vm288, %v270, 0.0
  %v391 = vadd.f32 %v389, %v390
  %v392 = vsel %vm288, %v286, 0.0
  %v393 = vadd.f32 %v391, %v392
  %v394 = vsel %vm288, %v239, 0.0
  %v395 = vsel %vm288, %v255, 0.0
  %v396 = vadd.f32 %v394, %v395
  %v397 = vsel %vm288, %v271, 0.0
  %v398 = vadd.f32 %v396, %v397
  %v399 = vsel %vm288, %v287, 0.0
  %v400 = vadd.f32 %v398, %v399
  %v401 = vpack.c.bf16 %v302, %v295
  %v402 = vpack.c.bf16 %v316, %v309
  %v403 = vpack.c.bf16 %v330, %v323
  %v404 = vpack.c.bf16 %v344, %v337
  %v405 = vpack.c.bf16 %v358, %v351
  %v406 = vpack.c.bf16 %v372, %v365
  %v407 = vpack.c.bf16 %v386, %v379
  %v408 = vpack.c.bf16 %v400, %v393
  %v409 = vld [vmem:[%s3] sm:$0x3]
  %v411 = vsel %vm288, %v401, 0
  %v414 = vsel %vm288, %v402, 0
  %v417 = vsel %vm288, %v403, 0
  %v420 = vsel %vm288, %v404, 0
  %v423 = vsel %vm288, %v405, 0
  %v426 = vsel %vm288, %v406, 0
  %v429 = vsel %vm288, %v407, 0
  %v432 = vsel %vm288, %v408, 0
  %vm434 = vcmask 1041408
  %v436 = vsel %vm434, %v409, 0
  %438 = vmatprep.subr.bf16.mxu0 0
  %439 = vmatpush1.bf16.msra.mxu0 %v436
  %440 = vmatprep.subr.bf16.mxu0 0
  %441 = vmatpush1.bf16.msra.mxu0 0
  %442 = vmatprep.subr.bf16.mxu0 0
  %443 = vmatpush1.bf16.msra.mxu0 0
  %444 = vmatprep.subr.bf16.mxu0 0
  %445 = vmatpush1.bf16.msra.mxu0 0
  %446 = vmatprep.subr.bf16.mxu0 0
  %447 = vmatpush1.bf16.msra.mxu0 0
  %448 = vmatprep.subr.bf16.mxu0 0
  %449 = vmatpush1.bf16.msra.mxu0 0
  %450 = vmatprep.subr.bf16.mxu0 0
  %451 = vmatpush1.bf16.msra.mxu0 0
  %452 = vmatprep.subr.bf16.mxu0 0
  %453 = vmatpush1.bf16.msra.mxu0 0
  %454 = vmatprep.subr.bf16.mxu0 0
  %455 = vmatpush1.bf16.msra.mxu0 0
  %456 = vmatprep.subr.bf16.mxu0 0
  %457 = vmatpush1.bf16.msra.mxu0 0
  %458 = vmatprep.subr.bf16.mxu0 0
  %459 = vmatpush1.bf16.msra.mxu0 0
  %460 = vmatprep.subr.bf16.mxu0 0
  %461 = vmatpush1.bf16.msra.mxu0 0
  %462 = vmatprep.subr.bf16.mxu0 0
  %463 = vmatpush1.bf16.msra.mxu0 0
  %464 = vmatprep.subr.bf16.mxu0 0
  %465 = vmatpush1.bf16.msra.mxu0 0
  %466 = vmatprep.subr.bf16.mxu0 0
  %467 = vmatpush1.bf16.msra.mxu0 0
  %468 = vmatprep.subr.bf16.mxu0 0
  %469 = vmatpush1.bf16.msra.mxu0 0
  %470 = vmatprep.mubr.bf16.mxu0 0
  %471 = vmatmul.mubr.bf16.gmra.mrb[0].mxu0 %v411
  %v472 = vpop.f32.mrb[0].mxu0
  %v473 = vadd.f32 0.0, %v472
  %v474 = vpop.f32.mrb[0].mxu0
  %v475 = vpop.f32.mrb[0].mxu0
  %v476 = vadd.f32 0.0, %v475
  %v477 = vpop.f32.mrb[0].mxu0
  %478 = vmatprep.mubr.bf16.mxu0 0
  %479 = vmatmul.mubr.bf16.gmra.mrb[0].mxu0 %v414
  %v480 = vpop.f32.mrb[0].mxu0
  %v481 = vadd.f32 0.0, %v480
  %v482 = vpop.f32.mrb[0].mxu0
  %v483 = vpop.f32.mrb[0].mxu0
  %v484 = vadd.f32 0.0, %v483
  %v485 = vpop.f32.mrb[0].mxu0
  %486 = vmatprep.mubr.bf16.mxu0 0
  %487 = vmatmul.mubr.bf16.gmra.mrb[0].mxu0 %v417
  %v488 = vpop.f32.mrb[0].mxu0
  %v489 = vadd.f32 0.0, %v488
  %v490 = vpop.f32.mrb[0].mxu0
  %v491 = vpop.f32.mrb[0].mxu0
  %v492 = vadd.f32 0.0, %v491
  %v493 = vpop.f32.mrb[0].mxu0
  %494 = vmatprep.mubr.bf16.mxu0 0
  %495 = vmatmul.mubr.bf16.gmra.mrb[0].mxu0 %v420
  %v496 = vpop.f32.mrb[0].mxu0
  %v497 = vadd.f32 0.0, %v496
  %v498 = vpop.f32.mrb[0].mxu0
  %v499 = vpop.f32.mrb[0].mxu0
  %v500 = vadd.f32 0.0, %v499
  %v501 = vpop.f32.mrb[0].mxu0
  %502 = vmatprep.mubr.bf16.mxu0 0
  %503 = vmatmul.mubr.bf16.gmra.mrb[0].mxu0 %v423
  %v504 = vpop.f32.mrb[0].mxu0
  %v505 = vadd.f32 0.0, %v504
  %v506 = vpop.f32.mrb[0].mxu0
  %v507 = vpop.f32.mrb[0].mxu0
  %v508 = vadd.f32 0.0, %v507
  %v509 = vpop.f32.mrb[0].mxu0
  %510 = vmatprep.mubr.bf16.mxu0 0
  %511 = vmatmul.mubr.bf16.gmra.mrb[0].mxu0 %v426
  %v512 = vpop.f32.mrb[0].mxu0
  %v513 = vadd.f32 0.0, %v512
  %v514 = vpop.f32.mrb[0].mxu0
  %v515 = vpop.f32.mrb[0].mxu0
  %v516 = vadd.f32 0.0, %v515
  %v517 = vpop.f32.mrb[0].mxu0
  %518 = vmatprep.mubr.bf16.mxu0 0
  %519 = vmatmul.mubr.bf16.gmra.mrb[0].mxu0 %v429
  %v520 = vpop.f32.mrb[0].mxu0
  %v521 = vadd.f32 0.0, %v520
  %v522 = vpop.f32.mrb[0].mxu0
  %v523 = vpop.f32.mrb[0].mxu0
  %v524 = vadd.f32 0.0, %v523
  %v525 = vpop.f32.mrb[0].mxu0
  %526 = vmatprep.mubr.bf16.mxu0 0
  %527 = vmatmul.mubr.bf16.gmra.mrb[0].mxu0 %v432
  %v528 = vpop.f32.mrb[0].mxu0
  %v529 = vadd.f32 0.0, %v528
  %v530 = vpop.f32.mrb[0].mxu0
  %v531 = vpop.f32.mrb[0].mxu0
  %v532 = vadd.f32 0.0, %v531
  %v533 = vpop.f32.mrb[0].mxu0
  %534 = vdwg.mxu0
  %535 = vst [vmem:[%s4] sm:$0xff] %v473
  %536 = vst [vmem:[%s4 + $0x8] sm:$0xff] %v476
  %537 = vst [vmem:[%s4 + $0x10] sm:$0xff] %v481
  %538 = vst [vmem:[%s4 + $0x18] sm:$0xff] %v484
  %539 = vst [vmem:[%s4 + $0x20] sm:$0xff] %v489
  %540 = vst [vmem:[%s4 + $0x28] sm:$0xff] %v492
  %541 = vst [vmem:[%s4 + $0x30] sm:$0xff] %v497
  %542 = vst [vmem:[%s4 + $0x38] sm:$0xff] %v500
  %543 = vst [vmem:[%s4 + $0x40] sm:$0xff] %v505
  %544 = vst [vmem:[%s4 + $0x48] sm:$0xff] %v508
  %545 = vst [vmem:[%s4 + $0x50] sm:$0xff] %v513
  %546 = vst [vmem:[%s4 + $0x58] sm:$0xff] %v516
  %547 = vst [vmem:[%s4 + $0x60] sm:$0xff] %v521
  %548 = vst [vmem:[%s4 + $0x68] sm:$0xff] %v524
  %549 = vst [vmem:[%s4 + $0x70] sm:$0xff] %v529
  %550 = vst [vmem:[%s4 + $0x78] sm:$0xff] %v532
  // Predicated region
  $region18: #{transitionden_forward.1} parent=0 // pred_check
    _
  $region19: #{transitionden_forward.1} parent=0 // pred_check_branch
    %552 = sbr.rel (0) target = $region21
  $region20: #{transitionden_forward.1} parent=0 // pred_region
    _
  $region21: #{transitionden_forward.1} parent=0 // pred_fallthru
    _
  // Predicated region
  $region22: #{transitionden_forward.1} parent=0 // pred_check
    _
  $region23: #{transitionden_forward.1} parent=0 // pred_check_branch
    %554 = sbr.rel (0) target = $region25
  $region24: #{transitionden_forward.1} parent=0 // pred_region
    _
  $region25: #{transitionden_forward.1} parent=0 // pred_fallthru
    _

</llo_original>
